<compile_context>
chip_gen: v7x
topology: tpu7x:2x2x1
jax: 0.10.0
libtpu: 0.0.40
codegen_flags: <defaults>
</compile_context>

<pallas_src>
import functools

import jax
import jax.numpy as jnp
from jax.experimental import pallas as pl
from jax.experimental.pallas import tpu as pltpu

_LANE = 128      # f32 lane width
_SUBLANE = 8     # f32 sublane width
_NEG_BIG = -1e30  # pad value for b2 lanes -> exp() == 0 in softmax


def _round_up(x, m):
    return (x + m - 1) // m * m


def _mlp_softmax_kernel(x_ref, w1_ref, b1_ref, w2_ref, b2_ref, o_ref,
                        *, compute_dtype):
    x = x_ref[...]
    if compute_dtype is not None:
        x = x.astype(compute_dtype)  # in-kernel cast rides a free VPU slot
    # --- Linear 1 (MXU, f32 accumulate) + bias ---
    h = jnp.dot(x, w1_ref[...], preferred_element_type=jnp.float32) + b1_ref[...]
    # --- LeakyReLU (negative_slope=0.01, torch default) ---
    h = jnp.maximum(h, 0.01 * h)
    if compute_dtype is not None:
        h = h.astype(compute_dtype)
    # --- Linear 2 (MXU, f32 accumulate) + bias ---
    # Padded output lanes carry b2 = -1e30, so they vanish in the softmax
    # without any in-kernel iota/compare/select mask.
    z = jnp.dot(h, w2_ref[...], preferred_element_type=jnp.float32) + b2_ref[...]
    # --- Softmax over the last axis (exact f32 divide; denominator is only
    # `tb` values per tile, so exactness is essentially free) ---
    z = z - jnp.max(z, axis=-1, keepdims=True)
    e = jnp.exp(z)
    o_ref[...] = (e / jnp.sum(e, axis=-1, keepdims=True)).astype(o_ref.dtype)


def _vmem_estimate_bytes(tb, in_size, hid_p, out_p, x_bytes, mm_bytes,
                         single_buffer_weights):
    wbuf = 1 if single_buffer_weights else 2
    weights = (in_size * hid_p + hid_p * out_p) * mm_bytes * wbuf
    biases = (hid_p + out_p) * 4 * wbuf
    x_tiles = 2 * tb * in_size * x_bytes            # double-buffered input tile
    out_tiles = 2 * tb * out_p * 4                  # double-buffered output tile
    inter = tb * hid_p * 4 + tb * hid_p * mm_bytes + 3 * tb * out_p * 4
    return weights + biases + x_tiles + out_tiles + inter


def survival_predictor_forward(x, w1, b1, w2, b2, *, block_batch=1024,
                               compute_dtype=None, out_dtype=jnp.float32):
    """Fused Linear -> LeakyReLU -> Linear -> Softmax.

    x: (B, in); w1: (in, hid); b1: (1, hid); w2: (hid, out); b2: (1, out).
    Weights are stored as (in_features, out_features), i.e. x @ W + b equals
    torch Linear with W = W_torch.T.
    compute_dtype: optional MXU operand dtype (jnp.bfloat16 on v6e/v7x for
    ~2x MXU rate and half the weight/x bytes); accumulation and all
    elementwise/softmax math remain float32.
    block_batch: batch tile; 1024 is a good v6e default. On v7x (64 MiB VMEM)
    with very large hidden sizes use 256-512.
    Returns (B, out) softmax probabilities in out_dtype.
    """
    B, in_size = x.shape
    hidden = w1.shape[1]
    out_size = w2.shape[1]

    # Lane-pad hidden / out; pick a sublane-aligned batch tile.
    hid_p = _round_up(hidden, _LANE)
    out_p = _round_up(out_size, _LANE)
    tb = _round_up(min(block_batch, B), _SUBLANE)
    b_p = _round_up(B, tb)

    mm_dtype = compute_dtype if compute_dtype is not None else x.dtype
    mm_bytes = jnp.dtype(mm_dtype).itemsize
    x_bytes = jnp.dtype(x.dtype).itemsize

    # x stays in its original dtype/layout; only batch-pad when strictly needed.
    x_p = x if b_p == B else jnp.pad(x, ((0, b_p - B), (0, 0)))
    w1_p = jnp.pad(w1, ((0, 0), (0, hid_p - hidden))).astype(mm_dtype)
    b1_p = jnp.pad(b1, ((0, 0), (0, hid_p - hidden))).astype(jnp.float32)
    w2_p = jnp.pad(w2, ((0, hid_p - hidden), (0, out_p - out_size))).astype(mm_dtype)
    # Pad b2 with a huge negative constant so padded logit lanes exp() to zero.
    b2_p = jnp.pad(b2.astype(jnp.float32), ((0, 0), (0, out_p - out_size)),
                   constant_values=_NEG_BIG)

    grid = (b_p // tb,)
    cost = pl.CostEstimate(
        flops=2 * b_p * (in_size * hid_p + hid_p * out_p),
        transcendentals=b_p * out_p,
        bytes_accessed=(x_p.size * x_bytes
                        + (w1_p.size + w2_p.size) * mm_bytes
                        + (b1_p.size + b2_p.size) * 4
                        + b_p * out_p * jnp.dtype(out_dtype).itemsize),
    )
    vmem = pltpu.MemorySpace.VMEM

    def build(single_buffer_weights):
        w_kwargs = ({"pipeline_mode": pl.Buffered(1)}
                    if single_buffer_weights else {})
        vmem_limit = _vmem_estimate_bytes(tb, in_size, hid_p, out_p, x_bytes,
                                          mm_bytes, single_buffer_weights)
        vmem_limit = min(max(int(1.5 * vmem_limit) + (2 << 20), 8 << 20), 64 << 20)
        return pl.pallas_call(
            functools.partial(_mlp_softmax_kernel, compute_dtype=compute_dtype),
            out_shape=jax.ShapeDtypeStruct((b_p, out_p), out_dtype),
            grid_spec=pl.GridSpec(
                grid=grid,
                in_specs=[
                    # x / out stream over the batch axis (lane-dense stores).
                    pl.BlockSpec((tb, in_size), lambda i: (i, 0),
                                 memory_space=vmem),
                    # Weights / biases resident across all grid steps.
                    pl.BlockSpec((in_size, hid_p), lambda i: (0, 0),
                                 memory_space=vmem, **w_kwargs),
                    pl.BlockSpec((1, hid_p), lambda i: (0, 0),
                                 memory_space=vmem, **w_kwargs),
                    pl.BlockSpec((hid_p, out_p), lambda i: (0, 0),
                                 memory_space=vmem, **w_kwargs),
                    pl.BlockSpec((1, out_p), lambda i: (0, 0),
                                 memory_space=vmem, **w_kwargs),
                ],
                out_specs=pl.BlockSpec((tb, out_p), lambda i: (i, 0),
                                       memory_space=vmem),
            ),
            compiler_params=pltpu.CompilerParams(
                dimension_semantics=("parallel",),   # batch axis -> 2 TCs on v7x
                vmem_limit_bytes=vmem_limit,
            ),
            cost_estimate=cost,
        )

    try:
        out_pad = jax.block_until_ready(build(True)(x_p, w1_p, b1_p, w2_p, b2_p))
    except Exception:
        # TODO(synk): pl.Buffered(1) single-buffering of the resident weights is
        # not accepted by this JAX version; fall back to default double-buffering.
        out_pad = jax.block_until_ready(build(False)(x_p, w1_p, b1_p, w2_p, b2_p))

    # Strip batch / lane padding outside the kernel (lane-dense inside).
    return out_pad[:B, :out_size]


def _torch_linear_init(key, fan_in, fan_out):
    """Mimic torch.nn.Linear default init (uniform +/- 1/sqrt(fan_in)).
    Returns (W of shape (fan_in, fan_out), bias of shape (1, fan_out))."""
    kw, kb = jax.random.split(key)
    bound = 1.0 / jnp.sqrt(fan_in)
    w = jax.random.uniform(kw, (fan_in, fan_out), jnp.float32, -bound, bound)
    b = jax.random.uniform(kb, (1, fan_out), jnp.float32, -bound, bound)
    return w, b


if __name__ == "__main__":
    batch, input_size, hidden_size, output_size = 8, 16, 32, 4

    key = jax.random.PRNGKey(0)
    kx, k1, k2 = jax.random.split(key, 3)

    x = jax.random.normal(kx, (batch, input_size), jnp.float32)
    w1, b1 = _torch_linear_init(k1, input_size, hidden_size)
    w2, b2 = _torch_linear_init(k2, hidden_size, output_size)

    # Pure-JAX reference (equivalent to the torch forward).
    h_ref = x @ w1 + b1
    h_ref = jnp.where(h_ref > 0, h_ref, 0.01 * h_ref)
    ref = jax.nn.softmax(h_ref @ w2 + b2, axis=-1)

    # f32 MXU path (default): tight parity with the reference.
    out = survival_predictor_forward(x, w1, b1, w2, b2)
    out = jax.block_until_ready(out)
    assert out.shape == (batch, output_size)
    assert jnp.allclose(out, ref, atol=1e-3, rtol=1e-3), "f32 mismatch vs reference"
    assert jnp.allclose(jnp.sum(out, axis=-1), 1.0, atol=1e-5), "rows must sum to 1"

    # bf16 MXU operand path (v6e/v7x full-rate MXU); f32 accumulate + softmax.
    out_bf16 = survival_predictor_forward(x, w1, b1, w2, b2,
                                          compute_dtype=jnp.bfloat16)
    out_bf16 = jax.block_until_ready(out_bf16)
    assert out_bf16.shape == (batch, output_size)
    assert bool(jnp.all(jnp.isfinite(out_bf16)))
    assert jnp.allclose(jnp.sum(out_bf16, axis=-1), 1.0, atol=1e-4)
    assert jnp.allclose(out_bf16, ref, atol=5e-2, rtol=5e-2), "bf16 path far off"

    print("KERNEL_OK")
</pallas_src>

<mosaic_0001>
module attributes {stable_mosaic.version = 11 : i64} {
  func.func @_mlp_softmax_kernel(%arg0: i32, %arg1: memref<8x16xf32, #tpu.memory_space<vmem>>, %arg2: memref<16x128xf32, #tpu.memory_space<vmem>>, %arg3: memref<1x128xf32, #tpu.memory_space<vmem>>, %arg4: memref<128x128xf32, #tpu.memory_space<vmem>>, %arg5: memref<1x128xf32, #tpu.memory_space<vmem>>, %arg6: memref<8x128xf32, #tpu.memory_space<vmem>>) attributes {dimension_semantics = [#tpu.dimension_semantics<parallel>], iteration_bounds = array<i64: 1>, scalar_prefetch = 0 : i64, scratch_operands = 0 : i64, tpu.core_type = #tpu.core_type<tc>, window_params = [{transform_indices = @transform_0, window_bounds = array<i64: 8, 16>}, {pipeline_mode = #tpu.pipeline_mode<synchronous>, transform_indices = @transform_1, window_bounds = array<i64: 16, 128>}, {pipeline_mode = #tpu.pipeline_mode<synchronous>, transform_indices = @transform_2, window_bounds = array<i64: 1, 128>}, {pipeline_mode = #tpu.pipeline_mode<synchronous>, transform_indices = @transform_3, window_bounds = array<i64: 128, 128>}, {pipeline_mode = #tpu.pipeline_mode<synchronous>, transform_indices = @transform_4, window_bounds = array<i64: 1, 128>}, {transform_indices = @transform_5, window_bounds = array<i64: 8, 128>}]} {
    %c0 = arith.constant 0 : index
    %c0_0 = arith.constant 0 : index
    %0 = vector.load %arg1[%c0, %c0_0] : memref<8x16xf32, #tpu.memory_space<vmem>>, vector<8x16xf32>
    %c0_1 = arith.constant 0 : index
    %c0_2 = arith.constant 0 : index
    %1 = vector.load %arg2[%c0_1, %c0_2] : memref<16x128xf32, #tpu.memory_space<vmem>>, vector<16x128xf32>
    %cst = arith.constant dense<0.000000e+00> : vector<8x128xf32>
    %2 = tpu.matmul %0, %1, %cst {dimension_numbers = #tpu.dot_dimension_numbers<[1], [0], [0], [1], [0, 0, 1, 1], [], []>} : vector<8x16xf32>, vector<16x128xf32>, vector<8x128xf32> -> vector<8x128xf32>
    %c0_3 = arith.constant 0 : index
    %c0_4 = arith.constant 0 : index
    %3 = vector.load %arg3[%c0_3, %c0_4] : memref<1x128xf32, #tpu.memory_space<vmem>>, vector<1x128xf32>
    %4 = vector.broadcast %3 : vector<1x128xf32> to vector<8x128xf32>
    %5 = arith.addf %2, %4 : vector<8x128xf32>
    %cst_5 = arith.constant 0.00999999977 : f32
    %6 = vector.broadcast %cst_5 : f32 to vector<8x128xf32>
    %7 = arith.mulf %6, %5 : vector<8x128xf32>
    %8 = arith.maximumf %5, %7 : vector<8x128xf32>
    %c0_6 = arith.constant 0 : index
    %c0_7 = arith.constant 0 : index
    %9 = vector.load %arg4[%c0_6, %c0_7] : memref<128x128xf32, #tpu.memory_space<vmem>>, vector<128x128xf32>
    %cst_8 = arith.constant dense<0.000000e+00> : vector<8x128xf32>
    %10 = tpu.matmul %8, %9, %cst_8 {dimension_numbers = #tpu.dot_dimension_numbers<[1], [0], [0], [1], [0, 0, 1, 1], [], []>} : vector<8x128xf32>, vector<128x128xf32>, vector<8x128xf32> -> vector<8x128xf32>
    %c0_9 = arith.constant 0 : index
    %c0_10 = arith.constant 0 : index
    %11 = vector.load %arg5[%c0_9, %c0_10] : memref<1x128xf32, #tpu.memory_space<vmem>>, vector<1x128xf32>
    %12 = vector.broadcast %11 : vector<1x128xf32> to vector<8x128xf32>
    %13 = arith.addf %10, %12 : vector<8x128xf32>
    %cst_11 = arith.constant dense<0xFF800000> : vector<8xf32>
    %14 = vector.multi_reduction <maximumf>, %13, %cst_11 [1] : vector<8x128xf32> to vector<8xf32>
    %15 = vector.shape_cast %14 : vector<8xf32> to vector<8x1xf32>
    %16 = vector.broadcast %15 : vector<8x1xf32> to vector<8x128xf32>
    %17 = arith.subf %13, %16 : vector<8x128xf32>
    %18 = math.exp %17 : vector<8x128xf32>
    %cst_12 = arith.constant dense<0.000000e+00> : vector<8xf32>
    %19 = vector.multi_reduction <add>, %18, %cst_12 [1] : vector<8x128xf32> to vector<8xf32>
    %20 = vector.shape_cast %19 : vector<8xf32> to vector<8x1xf32>
    %21 = vector.broadcast %20 : vector<8x1xf32> to vector<8x128xf32>
    %22 = arith.divf %18, %21 : vector<8x128xf32>
    %c0_13 = arith.constant 0 : index
    %c0_14 = arith.constant 0 : index
    %23 = vector.load %arg6[%c0_13, %c0_14] : memref<8x128xf32, #tpu.memory_space<vmem>>, vector<8x128xf32>
    tpu.vector_store %arg6[%c0_13, %c0_14], %22 {strides = array<i32>} : memref<8x128xf32, #tpu.memory_space<vmem>>, vector<8x128xf32>,
    return
  }
  func.func @transform_0(%arg0: i32) -> (i32, i32) {
    %c0_i32 = arith.constant 0 : i32
    %c0_i32_0 = arith.constant 0 : i32
    return %arg0, %c0_i32 : i32, i32
  }
  func.func @transform_1(%arg0: i32) -> (i32, i32) {
    %c0_i32 = arith.constant 0 : i32
    %c0_i32_0 = arith.constant 0 : i32
    %c0_i32_1 = arith.constant 0 : i32
    return %c0_i32, %c0_i32_0 : i32, i32
  }
  func.func @transform_2(%arg0: i32) -> (i32, i32) {
    %c0_i32 = arith.constant 0 : i32
    %c0_i32_0 = arith.constant 0 : i32
    %c0_i32_1 = arith.constant 0 : i32
    return %c0_i32, %c0_i32_0 : i32, i32
  }
  func.func @transform_3(%arg0: i32) -> (i32, i32) {
    %c0_i32 = arith.constant 0 : i32
    %c0_i32_0 = arith.constant 0 : i32
    %c0_i32_1 = arith.constant 0 : i32
    return %c0_i32, %c0_i32_0 : i32, i32
  }
  func.func @transform_4(%arg0: i32) -> (i32, i32) {
    %c0_i32 = arith.constant 0 : i32
    %c0_i32_0 = arith.constant 0 : i32
    %c0_i32_1 = arith.constant 0 : i32
    return %c0_i32, %c0_i32_0 : i32, i32
  }
  func.func @transform_5(%arg0: i32) -> (i32, i32) {
    %c0_i32 = arith.constant 0 : i32
    %c0_i32_0 = arith.constant 0 : i32
    return %arg0, %c0_i32 : i32, i32
  }
}

module attributes {stable_mosaic.version = 11 : i64} {
  func.func @_mlp_softmax_kernel(%arg0: i32, %arg1: memref<8x16xf32, #tpu.memory_space<vmem>>, %arg2: memref<16x128xf32, #tpu.memory_space<vmem>>, %arg3: memref<1x128xf32, #tpu.memory_space<vmem>>, %arg4: memref<128x128xf32, #tpu.memory_space<vmem>>, %arg5: memref<1x128xf32, #tpu.memory_space<vmem>>, %arg6: memref<8x128xf32, #tpu.memory_space<vmem>>) attributes {dimension_semantics = [#tpu.dimension_semantics<parallel>], iteration_bounds = array<i64: 1>, scalar_prefetch = 0 : i64, scratch_operands = 0 : i64, tpu.core_type = #tpu.core_type<tc>, window_params = [{transform_indices = @transform_0, window_bounds = array<i64: 8, 16>}, {pipeline_mode = #tpu.pipeline_mode<synchronous>, transform_indices = @transform_1, window_bounds = array<i64: 16, 128>}, {pipeline_mode = #tpu.pipeline_mode<synchronous>, transform_indices = @transform_2, window_bounds = array<i64: 1, 128>}, {pipeline_mode = #tpu.pipeline_mode<synchronous>, transform_indices = @transform_3, window_bounds = array<i64: 128, 128>}, {pipeline_mode = #tpu.pipeline_mode<synchronous>, transform_indices = @transform_4, window_bounds = array<i64: 1, 128>}, {transform_indices = @transform_5, window_bounds = array<i64: 8, 128>}]} {
    %c0 = arith.constant 0 : index
    %c0_0 = arith.constant 0 : index
    %0 = vector.load %arg1[%c0, %c0_0] : memref<8x16xf32, #tpu.memory_space<vmem>>, vector<8x16xf32>
    %c0_1 = arith.constant 0 : index
    %c0_2 = arith.constant 0 : index
    %1 = vector.load %arg2[%c0_1, %c0_2] : memref<16x128xf32, #tpu.memory_space<vmem>>, vector<16x128xf32>
    %cst = arith.constant dense<0.000000e+00> : vector<8x128xf32>
    %2 = tpu.matmul %0, %1, %cst {dimension_numbers = #tpu.dot_dimension_numbers<[1], [0], [0], [1], [0, 0, 1, 1], [], []>} : vector<8x16xf32>, vector<16x128xf32>, vector<8x128xf32> -> vector<8x128xf32>
    %c0_3 = arith.constant 0 : index
    %c0_4 = arith.constant 0 : index
    %3 = vector.load %arg3[%c0_3, %c0_4] : memref<1x128xf32, #tpu.memory_space<vmem>>, vector<1x128xf32>
    %4 = vector.broadcast %3 : vector<1x128xf32> to vector<8x128xf32>
    %5 = arith.addf %2, %4 : vector<8x128xf32>
    %cst_5 = arith.constant 0.00999999977 : f32
    %6 = vector.broadcast %cst_5 : f32 to vector<8x128xf32>
    %7 = arith.mulf %6, %5 : vector<8x128xf32>
    %8 = arith.maximumf %5, %7 : vector<8x128xf32>
    %c0_6 = arith.constant 0 : index
    %c0_7 = arith.constant 0 : index
    %9 = vector.load %arg4[%c0_6, %c0_7] : memref<128x128xf32, #tpu.memory_space<vmem>>, vector<128x128xf32>
    %cst_8 = arith.constant dense<0.000000e+00> : vector<8x128xf32>
    %10 = tpu.matmul %8, %9, %cst_8 {dimension_numbers = #tpu.dot_dimension_numbers<[1], [0], [0], [1], [0, 0, 1, 1], [], []>} : vector<8x128xf32>, vector<128x128xf32>, vector<8x128xf32> -> vector<8x128xf32>
    %c0_9 = arith.constant 0 : index
    %c0_10 = arith.constant 0 : index
    %11 = vector.load %arg5[%c0_9, %c0_10] : memref<1x128xf32, #tpu.memory_space<vmem>>, vector<1x128xf32>
    %12 = vector.broadcast %11 : vector<1x128xf32> to vector<8x128xf32>
    %13 = arith.addf %10, %12 : vector<8x128xf32>
    %cst_11 = arith.constant dense<0xFF800000> : vector<8xf32>
    %14 = vector.multi_reduction <maximumf>, %13, %cst_11 [1] : vector<8x128xf32> to vector<8xf32>
    %15 = vector.shape_cast %14 : vector<8xf32> to vector<8x1xf32>
    %16 = vector.broadcast %15 : vector<8x1xf32> to vector<8x128xf32>
    %17 = arith.subf %13, %16 : vector<8x128xf32>
    %18 = math.exp %17 : vector<8x128xf32>
    %cst_12 = arith.constant dense<0.000000e+00> : vector<8xf32>
    %19 = vector.multi_reduction <add>, %18, %cst_12 [1] : vector<8x128xf32> to vector<8xf32>
    %20 = vector.shape_cast %19 : vector<8xf32> to vector<8x1xf32>
    %21 = vector.broadcast %20 : vector<8x1xf32> to vector<8x128xf32>
    %22 = arith.divf %18, %21 : vector<8x128xf32>
    %c0_13 = arith.constant 0 : index
    %c0_14 = arith.constant 0 : index
    %23 = vector.load %arg6[%c0_13, %c0_14] : memref<8x128xf32, #tpu.memory_space<vmem>>, vector<8x128xf32>
    tpu.vector_store %arg6[%c0_13, %c0_14], %22 {strides = array<i32>} : memref<8x128xf32, #tpu.memory_space<vmem>>, vector<8x128xf32>,
    return
  }
  func.func @transform_0(%arg0: i32) -> (i32, i32) {
    %c0_i32 = arith.constant 0 : i32
    %c0_i32_0 = arith.constant 0 : i32
    return %arg0, %c0_i32 : i32, i32
  }
  func.func @transform_1(%arg0: i32) -> (i32, i32) {
    %c0_i32 = arith.constant 0 : i32
    %c0_i32_0 = arith.constant 0 : i32
    %c0_i32_1 = arith.constant 0 : i32
    return %c0_i32, %c0_i32_0 : i32, i32
  }
  func.func @transform_2(%arg0: i32) -> (i32, i32) {
    %c0_i32 = arith.constant 0 : i32
    %c0_i32_0 = arith.constant 0 : i32
    %c0_i32_1 = arith.constant 0 : i32
    return %c0_i32, %c0_i32_0 : i32, i32
  }
  func.func @transform_3(%arg0: i32) -> (i32, i32) {
    %c0_i32 = arith.constant 0 : i32
    %c0_i32_0 = arith.constant 0 : i32
    %c0_i32_1 = arith.constant 0 : i32
    return %c0_i32, %c0_i32_0 : i32, i32
  }
  func.func @transform_4(%arg0: i32) -> (i32, i32) {
    %c0_i32 = arith.constant 0 : i32
    %c0_i32_0 = arith.constant 0 : i32
    %c0_i32_1 = arith.constant 0 : i32
    return %c0_i32, %c0_i32_0 : i32, i32
  }
  func.func @transform_5(%arg0: i32) -> (i32, i32) {
    %c0_i32 = arith.constant 0 : i32
    %c0_i32_0 = arith.constant 0 : i32
    return %arg0, %c0_i32 : i32, i32
  }
}

</mosaic_0001>

<llo_original>
// kernel: tpu_custom_call.1
$region0: #{tpu_custom_call.1}
  #allocation0 [shape = 'u32[]', space=smem, size = 0x4, offset = 0x4, fixed_abs, tag = 'smem constant byte address 0x4 - core index']
  #allocation1 [shape = 'u32[144,128]{1,0:T(1,128)}', space=vmem, size = 0x12000, scoped, tag = 'internal scratch']
  %s0 = inlined_call_operand.hbm [shape: f32[8,16], index: 0, kind: input, shape index: {}]
  %s1 = inlined_call_operand.hbm [shape: f32[16,128], index: 1, kind: input, shape index: {}]
  %s2 = inlined_call_operand.vmem [shape: f32[1,128], index: 2, kind: input, shape index: {}]
  %s3 = inlined_call_operand.hbm [shape: f32[128,128], index: 3, kind: input, shape index: {}]
  %s4 = inlined_call_operand.vmem [shape: f32[1,128], index: 4, kind: input, shape index: {}]
  %s5 = inlined_call_operand.hbm [shape: f32[8,128], index: 5, kind: output, shape index: {}]
  %s6 = sld [smem:[#allocation0]]
  $region42: #{tpu_custom_call.1} parent=0
    _
  %s8 = ssub.s32 1, %s6
  %s9 = scalar_select 0, %s8, %s6
  $region1: #{tpu_custom_call.1} parent=0
    #allocation2 [shape = 'u8[4096]{0}', space=vmem, size = 0x1000, scoped, tag = 'input window, operand 0, single buffered']
    #allocation3 [shape = 's32[1]{0}', space=sflag, size = 0x4, scoped, tag = 'scoped memory for tpu_custom_call.1']
    #allocation4 [shape = 's32[1]{0}', space=sflag, size = 0x4, scoped, tag = 'scoped memory for tpu_custom_call.1']
    #allocation5 [shape = 'u8[8192]{0}', space=vmem, size = 0x2000, scoped, tag = 'input window, operand 1, single buffered']
    #allocation6 [shape = 's32[1]{0}', space=sflag, size = 0x4, scoped, tag = 'scoped memory for tpu_custom_call.1']
    #allocation7 [shape = 'u8[65536]{0}', space=vmem, size = 0x10000, scoped, tag = 'input window, operand 3, single buffered']
    #allocation8 [shape = 'u8[4096]{0}', space=vmem, size = 0x1000, scoped, tag = 'output window, operand 0, single buffered']
    %10 = vsyncpa [#allocation3], 0
    %11 = vsyncpa [#allocation6], 0
    %12 = vsyncpa [#allocation4], 0
    // Predicated region
    $region2: #{tpu_custom_call.1} parent=1 // pred_check
      _
    $region3: #{tpu_custom_call.1} parent=1 // pred_check_branch
      %14 = sbr.rel (0) target = $region5
    $region4: #{tpu_custom_call.1} parent=1 // pred_region
      %s16 = ssub.s32 128, 128
      %17 = vsyncadd [#allocation3], %s16
      %s19 = sshll.u32 [#allocation2], 4
      %s20 = int_to_ptr.vmem [resolvable:$true] %s19
      %22 = dma.hbm_to_vmem [thread:$0]  %s0, 128, %s20, [#allocation3]
    $region5: #{tpu_custom_call.1} parent=1 // pred_fallthru
      _
    // Predicated region
    $region6: #{tpu_custom_call.1} parent=1 // pred_check
      _
    $region7: #{tpu_custom_call.1} parent=1 // pred_check_branch
      %24 = sbr.rel (0) target = $region9
    $region8: #{tpu_custom_call.1} parent=1 // pred_region
      %s26 = ssub.s32 256, 256
      %27 = vsyncadd [#allocation6], %s26
      %s28 = sshll.u32 [#allocation5], 4
      %s29 = int_to_ptr.vmem [resolvable:$true] %s28
      %34 = dma.hbm_to_vmem [thread:$0]  %s1, 256, %s29, [#allocation6], 128, 128, 8
    $region9: #{tpu_custom_call.1} parent=1 // pred_fallthru
      _
    // Predicated region
    $region10: #{tpu_custom_call.1} parent=1 // pred_check
      _
    $region11: #{tpu_custom_call.1} parent=1 // pred_check_branch
      %36 = sbr.rel (0) target = $region13
    $region12: #{tpu_custom_call.1} parent=1 // pred_region
      _
    $region13: #{tpu_custom_call.1} parent=1 // pred_fallthru
      _
    // Predicated region
    $region14: #{tpu_custom_call.1} parent=1 // pred_check
      _
    $region15: #{tpu_custom_call.1} parent=1 // pred_check_branch
      %38 = sbr.rel (0) target = $region17
    $region16: #{tpu_custom_call.1} parent=1 // pred_region
      %s40 = ssub.s32 2048, 2048
      %41 = vsyncadd [#allocation6], %s40
      %s42 = sshll.u32 [#allocation7], 4
      %s43 = int_to_ptr.vmem [resolvable:$true] %s42
      %48 = dma.hbm_to_vmem [thread:$0]  %s3, 2048, %s43, [#allocation6], 128, 128, 8
    $region17: #{tpu_custom_call.1} parent=1 // pred_fallthru
      _
    // Predicated region
    $region18: #{tpu_custom_call.1} parent=1 // pred_check
      _
    $region19: #{tpu_custom_call.1} parent=1 // pred_check_branch
      %50 = sbr.rel (0) target = $region21
    $region20: #{tpu_custom_call.1} parent=1 // pred_region
      _
    $region21: #{tpu_custom_call.1} parent=1 // pred_fallthru
      _
    // Predicated region
    $region22: #{tpu_custom_call.1} parent=1 // pred_check
      _
    $region23: #{tpu_custom_call.1} parent=1 // pred_check_branch
      %52 = sbr.rel (0) target = $region25
    $region24: #{tpu_custom_call.1} parent=1 // pred_region
      %53 = dma.done [#allocation3], 128
    $region25: #{tpu_custom_call.1} parent=1 // pred_fallthru
      _
    // Predicated region
    $region26: #{tpu_custom_call.1} parent=1 // pred_check
      _
    $region27: #{tpu_custom_call.1} parent=1 // pred_check_branch
      %55 = sbr.rel (0) target = $region29
    $region28: #{tpu_custom_call.1} parent=1 // pred_region
      %56 = dma.done [#allocation6], 256
    $region29: #{tpu_custom_call.1} parent=1 // pred_fallthru
      _
    // Predicated region
    $region30: #{tpu_custom_call.1} parent=1 // pred_check
      _
    $region31: #{tpu_custom_call.1} parent=1 // pred_check_branch
      %58 = sbr.rel (0) target = $region33
    $region32: #{tpu_custom_call.1} parent=1 // pred_region
      %59 = dma.done [#allocation6], 2048
    $region33: #{tpu_custom_call.1} parent=1 // pred_fallthru
      _
    %v60 = vld [vmem:[#allocation2] sm:$0xff]
    %v61 = vld [vmem:[#allocation5] sm:$0xff]
    %v62 = vld [vmem:[#allocation5 + $0x8] sm:$0xff]
    %v63 = vld [vmem:[%s2] sm:$0x1]
    %v65 = vlaneseq
    %v66 = vshrl.u32 %v65, 7
    %v67 = vsub.s32 0, %v66
    %v68 = vrot.slane %v63, %v67
    %vm70 = vcmask 130048
    %v72 = vsel %vm70, %v60, 0
    %74 = vmatprep.subr.mxu0 0.0
    %75 = vmatpush1.msra.mxu0 %v61
    %76 = vmatprep.subr.mxu0 0.0
    %77 = vmatpush1.msra.mxu0 %v62
    %78 = vmatprep.subr.mxu0 0.0
    %79 = vmatpush1.msra.mxu0 0.0
    %80 = vmatprep.subr.mxu0 0.0
    %81 = vmatpush1.msra.mxu0 0.0
    %82 = vmatprep.subr.mxu0 0.0
    %83 = vmatpush1.msra.mxu0 0.0
    %84 = vmatprep.subr.mxu0 0.0
    %85 = vmatpush1.msra.mxu0 0.0
    %86 = vmatprep.subr.mxu0 0.0
    %87 = vmatpush1.msra.mxu0 0.0
    %88 = vmatprep.subr.mxu0 0.0
    %89 = vmatpush1.msra.mxu0 0.0
    %90 = vmatprep.subr.mxu0 0.0
    %91 = vmatpush1.msra.mxu0 0.0
    %92 = vmatprep.subr.mxu0 0.0
    %93 = vmatpush1.msra.mxu0 0.0
    %94 = vmatprep.subr.mxu0 0.0
    %95 = vmatpush1.msra.mxu0 0.0
    %96 = vmatprep.subr.mxu0 0.0
    %97 = vmatpush1.msra.mxu0 0.0
    %98 = vmatprep.subr.mxu0 0.0
    %99 = vmatpush1.msra.mxu0 0.0
    %100 = vmatprep.subr.mxu0 0.0
    %101 = vmatpush1.msra.mxu0 0.0
    %102 = vmatprep.subr.mxu0 0.0
    %103 = vmatpush1.msra.mxu0 0.0
    %104 = vmatprep.subr.mxu0 0.0
    %105 = vmatpush1.msra.mxu0 0.0
    %106 = vmatprep.subr.mxu0 0.0
    %107 = vmatpush1.msra.mxu0 0.0
    %108 = vmatprep.subr.mxu0 0.0
    %109 = vmatpush1.msra.mxu0 0.0
    %110 = vmatprep.subr.mxu0 0.0
    %111 = vmatpush1.msra.mxu0 0.0
    %112 = vmatprep.subr.mxu0 0.0
    %113 = vmatpush1.msra.mxu0 0.0
    %114 = vmatprep.subr.mxu0 0.0
    %115 = vmatpush1.msra.mxu0 0.0
    %116 = vmatprep.subr.mxu0 0.0
    %117 = vmatpush1.msra.mxu0 0.0
    %118 = vmatprep.subr.mxu0 0.0
    %119 = vmatpush1.msra.mxu0 0.0
    %120 = vmatprep.subr.mxu0 0.0
    %121 = vmatpush1.msra.mxu0 0.0
    %122 = vmatprep.subr.mxu0 0.0
    %123 = vmatpush1.msra.mxu0 0.0
    %124 = vmatprep.subr.mxu0 0.0
    %125 = vmatpush1.msra.mxu0 0.0
    %126 = vmatprep.subr.mxu0 0.0
    %127 = vmatpush1.msra.mxu0 0.0
    %128 = vmatprep.subr.mxu0 0.0
    %129 = vmatpush1.msra.mxu0 0.0
    %130 = vmatprep.subr.mxu0 0.0
    %131 = vmatpush1.msra.mxu0 0.0
    %132 = vmatprep.subr.mxu0 0.0
    %133 = vmatpush1.msra.mxu0 0.0
    %134 = vmatprep.subr.mxu0 0.0
    %135 = vmatpush1.msra.mxu0 0.0
    %136 = vmatprep.subr.mxu0 0.0
    %137 = vmatpush1.msra.mxu0 0.0
    %138 = vmatprep.mubr.f32.mxu0 0.0
    %139 = vmatmul.mubr.f32.gmra.mrb[0].mxu0 %v72
    %v140 = vpop.f32.mrb[0].mxu0
    %v141 = vadd.f32 %v68, %v140
    %v142 = vpop.f32.mrb[0].mxu0
    %143 = vdwg.mxu0
    %v144 = vmul.f32 %v141, 0.01
    %v145 = vmax.f32 %v141, %v144
    %v146 = vld [vmem:[#allocation7] sm:$0xff]
    %v147 = vld [vmem:[#allocation7 + $0x8] sm:$0xff]
    %v148 = vld [vmem:[#allocation7 + $0x10] sm:$0xff]
    %v149 = vld [vmem:[#allocation7 + $0x18] sm:$0xff]
    %v150 = vld [vmem:[#allocation7 + $0x20] sm:$0xff]
    %v151 = vld [vmem:[#allocation7 + $0x28] sm:$0xff]
    %v152 = vld [vmem:[#allocation7 + $0x30] sm:$0xff]
    %v153 = vld [vmem:[#allocation7 + $0x38] sm:$0xff]
    %v154 = vld [vmem:[#allocation7 + $0x40] sm:$0xff]
    %v155 = vld [vmem:[#allocation7 + $0x48] sm:$0xff]
    %v156 = vld [vmem:[#allocation7 + $0x50] sm:$0xff]
    %v157 = vld [vmem:[#allocation7 + $0x58] sm:$0xff]
    %v158 = vld [vmem:[#allocation7 + $0x60] sm:$0xff]
    %v159 = vld [vmem:[#allocation7 + $0x68] sm:$0xff]
    %v160 = vld [vmem:[#allocation7 + $0x70] sm:$0xff]
    %v161 = vld [vmem:[#allocation7 + $0x78] sm:$0xff]
    %v162 = vld [vmem:[%s4] sm:$0x1]
    %v164 = vlaneseq
    %v165 = vshrl.u32 %v164, 7
    %v166 = vsub.s32 0, %v165
    %v167 = vrot.slane %v162, %v166
    %169 = vmatprep.subr.mxu0 0.0
    %170 = vmatpush1.msra.mxu0 %v146
    %171 = vmatprep.subr.mxu0 0.0
    %172 = vmatpush1.msra.mxu0 %v147
    %173 = vmatprep.subr.mxu0 0.0
    %174 = vmatpush1.msra.mxu0 %v148
    %175 = vmatprep.subr.mxu0 0.0
    %176 = vmatpush1.msra.mxu0 %v149
    %177 = vmatprep.subr.mxu0 0.0
    %178 = vmatpush1.msra.mxu0 %v150
    %179 = vmatprep.subr.mxu0 0.0
    %180 = vmatpush1.msra.mxu0 %v151
    %181 = vmatprep.subr.mxu0 0.0
    %182 = vmatpush1.msra.mxu0 %v152
    %183 = vmatprep.subr.mxu0 0.0
    %184 = vmatpush1.msra.mxu0 %v153
    %185 = vmatprep.subr.mxu0 0.0
    %186 = vmatpush1.msra.mxu0 %v154
    %187 = vmatprep.subr.mxu0 0.0
    %188 = vmatpush1.msra.mxu0 %v155
    %189 = vmatprep.subr.mxu0 0.0
    %190 = vmatpush1.msra.mxu0 %v156
    %191 = vmatprep.subr.mxu0 0.0
    %192 = vmatpush1.msra.mxu0 %v157
    %193 = vmatprep.subr.mxu0 0.0
    %194 = vmatpush1.msra.mxu0 %v158
    %195 = vmatprep.subr.mxu0 0.0
    %196 = vmatpush1.msra.mxu0 %v159
    %197 = vmatprep.subr.mxu0 0.0
    %198 = vmatpush1.msra.mxu0 %v160
    %199 = vmatprep.subr.mxu0 0.0
    %200 = vmatpush1.msra.mxu0 %v161
    %201 = vmatprep.subr.mxu0 0.0
    %202 = vmatpush1.msra.mxu0 0.0
    %203 = vmatprep.subr.mxu0 0.0
    %204 = vmatpush1.msra.mxu0 0.0
    %205 = vmatprep.subr.mxu0 0.0
    %206 = vmatpush1.msra.mxu0 0.0
    %207 = vmatprep.subr.mxu0 0.0
    %208 = vmatpush1.msra.mxu0 0.0
    %209 = vmatprep.subr.mxu0 0.0
    %210 = vmatpush1.msra.mxu0 0.0
    %211 = vmatprep.subr.mxu0 0.0
    %212 = vmatpush1.msra.mxu0 0.0
    %213 = vmatprep.subr.mxu0 0.0
    %214 = vmatpush1.msra.mxu0 0.0
    %215 = vmatprep.subr.mxu0 0.0
    %216 = vmatpush1.msra.mxu0 0.0
    %217 = vmatprep.subr.mxu0 0.0
    %218 = vmatpush1.msra.mxu0 0.0
    %219 = vmatprep.subr.mxu0 0.0
    %220 = vmatpush1.msra.mxu0 0.0
    %221 = vmatprep.subr.mxu0 0.0
    %222 = vmatpush1.msra.mxu0 0.0
    %223 = vmatprep.subr.mxu0 0.0
    %224 = vmatpush1.msra.mxu0 0.0
    %225 = vmatprep.subr.mxu0 0.0
    %226 = vmatpush1.msra.mxu0 0.0
    %227 = vmatprep.subr.mxu0 0.0
    %228 = vmatpush1.msra.mxu0 0.0
    %229 = vmatprep.subr.mxu0 0.0
    %230 = vmatpush1.msra.mxu0 0.0
    %231 = vmatprep.subr.mxu0 0.0
    %232 = vmatpush1.msra.mxu0 0.0
    %233 = vmatprep.mubr.f32.mxu0 0.0
    %234 = vmatmul.mubr.f32.gmra.mrb[0].mxu0 %v145
    %v235 = vpop.f32.mrb[0].mxu0
    %v236 = vadd.f32 %v167, %v235
    %v237 = vpop.f32.mrb[0].mxu0
    %238 = vdwg.mxu0
    %239 = vmax.xlane.f32.xlu0 %v236
    %v240 = vpop.xlane.xlu0 %239
    %v241 = vsub.f32 %v236, %v240
    %v242 = vmul.f32 %v241, 1.442695
    %v243 = vpow.pop %v242
    %244 = vadd.xlane.f32.xlu0 %v243
    %v245 = vpop.xlane.xlu0 %244
    %v246 = vrcp.pop %v245
    %v247 = vmul.f32 %v243, %v246
    %248 = vst [vmem:[#allocation8] sm:$0xff] %v247
    // Predicated region
    $region34: #{tpu_custom_call.1} parent=1 // pred_check
      _
    $region35: #{tpu_custom_call.1} parent=1 // pred_check_branch
      %250 = sbr.rel (0) target = $region37
    $region36: #{tpu_custom_call.1} parent=1 // pred_region
      %s252 = ssub.s32 128, 128
      %253 = vsyncadd [#allocation4], %s252
      %s255 = sshll.u32 [#allocation8], 4
      %s256 = int_to_ptr.vmem [resolvable:$true] %s255
      %258 = dma.vmem_to_hbm [thread:$0]  %s256, 128, %s5, [#allocation4]
    $region37: #{tpu_custom_call.1} parent=1 // pred_fallthru
      _
    // Predicated region
    $region38: #{tpu_custom_call.1} parent=1 // pred_check
      _
    $region39: #{tpu_custom_call.1} parent=1 // pred_check_branch
      %260 = sbr.rel (0) target = $region41
    $region40: #{tpu_custom_call.1} parent=1 // pred_region
      %261 = dma.done [#allocation4], 128
    $region41: #{tpu_custom_call.1} parent=1 // pred_fallthru
      _
    %262 = vsyncpa [#allocation3], 1
    %263 = vsyncpa [#allocation6], 1
    %264 = vsyncpa [#allocation4], 1

// kernel: tpu_custom_call.1
$region0: #{tpu_custom_call.1}
  #allocation0 [shape = 'u32[]', space=smem, size = 0x4, offset = 0x4, fixed_abs, tag = 'smem constant byte address 0x4 - core index']
  #allocation1 [shape = 'u32[144,128]{1,0:T(1,128)}', space=vmem, size = 0x12000, scoped, tag = 'internal scratch']
  %s0 = inlined_call_operand.hbm [shape: f32[8,16], index: 0, kind: input, shape index: {}]
  %s1 = inlined_call_operand.hbm [shape: f32[16,128], index: 1, kind: input, shape index: {}]
  %s2 = inlined_call_operand.vmem [shape: f32[1,128], index: 2, kind: input, shape index: {}]
  %s3 = inlined_call_operand.hbm [shape: f32[128,128], index: 3, kind: input, shape index: {}]
  %s4 = inlined_call_operand.vmem [shape: f32[1,128], index: 4, kind: input, shape index: {}]
  %s5 = inlined_call_operand.hbm [shape: f32[8,128], index: 5, kind: output, shape index: {}]
  %s6 = sld [smem:[#allocation0]]
  $region42: #{tpu_custom_call.1} parent=0
    _
  %s8 = ssub.s32 1, %s6
  %s9 = scalar_select 0, %s8, %s6
  $region1: #{tpu_custom_call.1} parent=0
    #allocation2 [shape = 'u8[4096]{0}', space=vmem, size = 0x1000, scoped, tag = 'input window, operand 0, single buffered']
    #allocation3 [shape = 's32[1]{0}', space=sflag, size = 0x4, scoped, tag = 'scoped memory for tpu_custom_call.1']
    #allocation4 [shape = 's32[1]{0}', space=sflag, size = 0x4, scoped, tag = 'scoped memory for tpu_custom_call.1']
    #allocation5 [shape = 'u8[8192]{0}', space=vmem, size = 0x2000, scoped, tag = 'input window, operand 1, single buffered']
    #allocation6 [shape = 's32[1]{0}', space=sflag, size = 0x4, scoped, tag = 'scoped memory for tpu_custom_call.1']
    #allocation7 [shape = 'u8[65536]{0}', space=vmem, size = 0x10000, scoped, tag = 'input window, operand 3, single buffered']
    #allocation8 [shape = 'u8[4096]{0}', space=vmem, size = 0x1000, scoped, tag = 'output window, operand 0, single buffered']
    %10 = vsyncpa [#allocation3], 0
    %11 = vsyncpa [#allocation6], 0
    %12 = vsyncpa [#allocation4], 0
    // Predicated region
    $region2: #{tpu_custom_call.1} parent=1 // pred_check
      _
    $region3: #{tpu_custom_call.1} parent=1 // pred_check_branch
      %14 = sbr.rel (0) target = $region5
    $region4: #{tpu_custom_call.1} parent=1 // pred_region
      %s16 = ssub.s32 128, 128
      %17 = vsyncadd [#allocation3], %s16
      %s19 = sshll.u32 [#allocation2], 4
      %s20 = int_to_ptr.vmem [resolvable:$true] %s19
      %22 = dma.hbm_to_vmem [thread:$0]  %s0, 128, %s20, [#allocation3]
    $region5: #{tpu_custom_call.1} parent=1 // pred_fallthru
      _
    // Predicated region
    $region6: #{tpu_custom_call.1} parent=1 // pred_check
      _
    $region7: #{tpu_custom_call.1} parent=1 // pred_check_branch
      %24 = sbr.rel (0) target = $region9
    $region8: #{tpu_custom_call.1} parent=1 // pred_region
      %s26 = ssub.s32 256, 256
      %27 = vsyncadd [#allocation6], %s26
      %s28 = sshll.u32 [#allocation5], 4
      %s29 = int_to_ptr.vmem [resolvable:$true] %s28
      %34 = dma.hbm_to_vmem [thread:$0]  %s1, 256, %s29, [#allocation6], 128, 128, 8
    $region9: #{tpu_custom_call.1} parent=1 // pred_fallthru
      _
    // Predicated region
    $region10: #{tpu_custom_call.1} parent=1 // pred_check
      _
    $region11: #{tpu_custom_call.1} parent=1 // pred_check_branch
      %36 = sbr.rel (0) target = $region13
    $region12: #{tpu_custom_call.1} parent=1 // pred_region
      _
    $region13: #{tpu_custom_call.1} parent=1 // pred_fallthru
      _
    // Predicated region
    $region14: #{tpu_custom_call.1} parent=1 // pred_check
      _
    $region15: #{tpu_custom_call.1} parent=1 // pred_check_branch
      %38 = sbr.rel (0) target = $region17
    $region16: #{tpu_custom_call.1} parent=1 // pred_region
      %s40 = ssub.s32 2048, 2048
      %41 = vsyncadd [#allocation6], %s40
      %s42 = sshll.u32 [#allocation7], 4
      %s43 = int_to_ptr.vmem [resolvable:$true] %s42
      %48 = dma.hbm_to_vmem [thread:$0]  %s3, 2048, %s43, [#allocation6], 128, 128, 8
    $region17: #{tpu_custom_call.1} parent=1 // pred_fallthru
      _
    // Predicated region
    $region18: #{tpu_custom_call.1} parent=1 // pred_check
      _
    $region19: #{tpu_custom_call.1} parent=1 // pred_check_branch
      %50 = sbr.rel (0) target = $region21
    $region20: #{tpu_custom_call.1} parent=1 // pred_region
      _
    $region21: #{tpu_custom_call.1} parent=1 // pred_fallthru
      _
    // Predicated region
    $region22: #{tpu_custom_call.1} parent=1 // pred_check
      _
    $region23: #{tpu_custom_call.1} parent=1 // pred_check_branch
      %52 = sbr.rel (0) target = $region25
    $region24: #{tpu_custom_call.1} parent=1 // pred_region
      %53 = dma.done [#allocation3], 128
    $region25: #{tpu_custom_call.1} parent=1 // pred_fallthru
      _
    // Predicated region
    $region26: #{tpu_custom_call.1} parent=1 // pred_check
      _
    $region27: #{tpu_custom_call.1} parent=1 // pred_check_branch
      %55 = sbr.rel (0) target = $region29
    $region28: #{tpu_custom_call.1} parent=1 // pred_region
      %56 = dma.done [#allocation6], 256
    $region29: #{tpu_custom_call.1} parent=1 // pred_fallthru
      _
    // Predicated region
    $region30: #{tpu_custom_call.1} parent=1 // pred_check
      _
    $region31: #{tpu_custom_call.1} parent=1 // pred_check_branch
      %58 = sbr.rel (0) target = $region33
    $region32: #{tpu_custom_call.1} parent=1 // pred_region
      %59 = dma.done [#allocation6], 2048
    $region33: #{tpu_custom_call.1} parent=1 // pred_fallthru
      _
    %v60 = vld [vmem:[#allocation2] sm:$0xff]
    %v61 = vld [vmem:[#allocation5] sm:$0xff]
    %v62 = vld [vmem:[#allocation5 + $0x8] sm:$0xff]
    %v63 = vld [vmem:[%s2] sm:$0x1]
    %v65 = vlaneseq
    %v66 = vshrl.u32 %v65, 7
    %v67 = vsub.s32 0, %v66
    %v68 = vrot.slane %v63, %v67
    %vm70 = vcmask 130048
    %v72 = vsel %vm70, %v60, 0
    %74 = vmatprep.subr.mxu0 0.0
    %75 = vmatpush1.msra.mxu0 %v61
    %76 = vmatprep.subr.mxu0 0.0
    %77 = vmatpush1.msra.mxu0 %v62
    %78 = vmatprep.subr.mxu0 0.0
    %79 = vmatpush1.msra.mxu0 0.0
    %80 = vmatprep.subr.mxu0 0.0
    %81 = vmatpush1.msra.mxu0 0.0
    %82 = vmatprep.subr.mxu0 0.0
    %83 = vmatpush1.msra.mxu0 0.0
    %84 = vmatprep.subr.mxu0 0.0
    %85 = vmatpush1.msra.mxu0 0.0
    %86 = vmatprep.subr.mxu0 0.0
    %87 = vmatpush1.msra.mxu0 0.0
    %88 = vmatprep.subr.mxu0 0.0
    %89 = vmatpush1.msra.mxu0 0.0
    %90 = vmatprep.subr.mxu0 0.0
    %91 = vmatpush1.msra.mxu0 0.0
    %92 = vmatprep.subr.mxu0 0.0
    %93 = vmatpush1.msra.mxu0 0.0
    %94 = vmatprep.subr.mxu0 0.0
    %95 = vmatpush1.msra.mxu0 0.0
    %96 = vmatprep.subr.mxu0 0.0
    %97 = vmatpush1.msra.mxu0 0.0
    %98 = vmatprep.subr.mxu0 0.0
    %99 = vmatpush1.msra.mxu0 0.0
    %100 = vmatprep.subr.mxu0 0.0
    %101 = vmatpush1.msra.mxu0 0.0
    %102 = vmatprep.subr.mxu0 0.0
    %103 = vmatpush1.msra.mxu0 0.0
    %104 = vmatprep.subr.mxu0 0.0
    %105 = vmatpush1.msra.mxu0 0.0
    %106 = vmatprep.subr.mxu0 0.0
    %107 = vmatpush1.msra.mxu0 0.0
    %108 = vmatprep.subr.mxu0 0.0
    %109 = vmatpush1.msra.mxu0 0.0
    %110 = vmatprep.subr.mxu0 0.0
    %111 = vmatpush1.msra.mxu0 0.0
    %112 = vmatprep.subr.mxu0 0.0
    %113 = vmatpush1.msra.mxu0 0.0
    %114 = vmatprep.subr.mxu0 0.0
    %115 = vmatpush1.msra.mxu0 0.0
    %116 = vmatprep.subr.mxu0 0.0
    %117 = vmatpush1.msra.mxu0 0.0
    %118 = vmatprep.subr.mxu0 0.0
    %119 = vmatpush1.msra.mxu0 0.0
    %120 = vmatprep.subr.mxu0 0.0
    %121 = vmatpush1.msra.mxu0 0.0
    %122 = vmatprep.subr.mxu0 0.0
    %123 = vmatpush1.msra.mxu0 0.0
    %124 = vmatprep.subr.mxu0 0.0
    %125 = vmatpush1.msra.mxu0 0.0
    %126 = vmatprep.subr.mxu0 0.0
    %127 = vmatpush1.msra.mxu0 0.0
    %128 = vmatprep.subr.mxu0 0.0
    %129 = vmatpush1.msra.mxu0 0.0
    %130 = vmatprep.subr.mxu0 0.0
    %131 = vmatpush1.msra.mxu0 0.0
    %132 = vmatprep.subr.mxu0 0.0
    %133 = vmatpush1.msra.mxu0 0.0
    %134 = vmatprep.subr.mxu0 0.0
    %135 = vmatpush1.msra.mxu0 0.0
    %136 = vmatprep.subr.mxu0 0.0
    %137 = vmatpush1.msra.mxu0 0.0
    %138 = vmatprep.mubr.f32.mxu0 0.0
    %139 = vmatmul.mubr.f32.gmra.mrb[0].mxu0 %v72
    %v140 = vpop.f32.mrb[0].mxu0
    %v141 = vadd.f32 %v68, %v140
    %v142 = vpop.f32.mrb[0].mxu0
    %143 = vdwg.mxu0
    %v144 = vmul.f32 %v141, 0.01
    %v145 = vmax.f32 %v141, %v144
    %v146 = vld [vmem:[#allocation7] sm:$0xff]
    %v147 = vld [vmem:[#allocation7 + $0x8] sm:$0xff]
    %v148 = vld [vmem:[#allocation7 + $0x10] sm:$0xff]
    %v149 = vld [vmem:[#allocation7 + $0x18] sm:$0xff]
    %v150 = vld [vmem:[#allocation7 + $0x20] sm:$0xff]
    %v151 = vld [vmem:[#allocation7 + $0x28] sm:$0xff]
    %v152 = vld [vmem:[#allocation7 + $0x30] sm:$0xff]
    %v153 = vld [vmem:[#allocation7 + $0x38] sm:$0xff]
    %v154 = vld [vmem:[#allocation7 + $0x40] sm:$0xff]
    %v155 = vld [vmem:[#allocation7 + $0x48] sm:$0xff]
    %v156 = vld [vmem:[#allocation7 + $0x50] sm:$0xff]
    %v157 = vld [vmem:[#allocation7 + $0x58] sm:$0xff]
    %v158 = vld [vmem:[#allocation7 + $0x60] sm:$0xff]
    %v159 = vld [vmem:[#allocation7 + $0x68] sm:$0xff]
    %v160 = vld [vmem:[#allocation7 + $0x70] sm:$0xff]
    %v161 = vld [vmem:[#allocation7 + $0x78] sm:$0xff]
    %v162 = vld [vmem:[%s4] sm:$0x1]
    %v164 = vlaneseq
    %v165 = vshrl.u32 %v164, 7
    %v166 = vsub.s32 0, %v165
    %v167 = vrot.slane %v162, %v166
    %169 = vmatprep.subr.mxu0 0.0
    %170 = vmatpush1.msra.mxu0 %v146
    %171 = vmatprep.subr.mxu0 0.0
    %172 = vmatpush1.msra.mxu0 %v147
    %173 = vmatprep.subr.mxu0 0.0
    %174 = vmatpush1.msra.mxu0 %v148
    %175 = vmatprep.subr.mxu0 0.0
    %176 = vmatpush1.msra.mxu0 %v149
    %177 = vmatprep.subr.mxu0 0.0
    %178 = vmatpush1.msra.mxu0 %v150
    %179 = vmatprep.subr.mxu0 0.0
    %180 = vmatpush1.msra.mxu0 %v151
    %181 = vmatprep.subr.mxu0 0.0
    %182 = vmatpush1.msra.mxu0 %v152
    %183 = vmatprep.subr.mxu0 0.0
    %184 = vmatpush1.msra.mxu0 %v153
    %185 = vmatprep.subr.mxu0 0.0
    %186 = vmatpush1.msra.mxu0 %v154
    %187 = vmatprep.subr.mxu0 0.0
    %188 = vmatpush1.msra.mxu0 %v155
    %189 = vmatprep.subr.mxu0 0.0
    %190 = vmatpush1.msra.mxu0 %v156
    %191 = vmatprep.subr.mxu0 0.0
    %192 = vmatpush1.msra.mxu0 %v157
    %193 = vmatprep.subr.mxu0 0.0
    %194 = vmatpush1.msra.mxu0 %v158
    %195 = vmatprep.subr.mxu0 0.0
    %196 = vmatpush1.msra.mxu0 %v159
    %197 = vmatprep.subr.mxu0 0.0
    %198 = vmatpush1.msra.mxu0 %v160
    %199 = vmatprep.subr.mxu0 0.0
    %200 = vmatpush1.msra.mxu0 %v161
    %201 = vmatprep.subr.mxu0 0.0
    %202 = vmatpush1.msra.mxu0 0.0
    %203 = vmatprep.subr.mxu0 0.0
    %204 = vmatpush1.msra.mxu0 0.0
    %205 = vmatprep.subr.mxu0 0.0
    %206 = vmatpush1.msra.mxu0 0.0
    %207 = vmatprep.subr.mxu0 0.0
    %208 = vmatpush1.msra.mxu0 0.0
    %209 = vmatprep.subr.mxu0 0.0
    %210 = vmatpush1.msra.mxu0 0.0
    %211 = vmatprep.subr.mxu0 0.0
    %212 = vmatpush1.msra.mxu0 0.0
    %213 = vmatprep.subr.mxu0 0.0
    %214 = vmatpush1.msra.mxu0 0.0
    %215 = vmatprep.subr.mxu0 0.0
    %216 = vmatpush1.msra.mxu0 0.0
    %217 = vmatprep.subr.mxu0 0.0
    %218 = vmatpush1.msra.mxu0 0.0
    %219 = vmatprep.subr.mxu0 0.0
    %220 = vmatpush1.msra.mxu0 0.0
    %221 = vmatprep.subr.mxu0 0.0
    %222 = vmatpush1.msra.mxu0 0.0
    %223 = vmatprep.subr.mxu0 0.0
    %224 = vmatpush1.msra.mxu0 0.0
    %225 = vmatprep.subr.mxu0 0.0
    %226 = vmatpush1.msra.mxu0 0.0
    %227 = vmatprep.subr.mxu0 0.0
    %228 = vmatpush1.msra.mxu0 0.0
    %229 = vmatprep.subr.mxu0 0.0
    %230 = vmatpush1.msra.mxu0 0.0
    %231 = vmatprep.subr.mxu0 0.0
    %232 = vmatpush1.msra.mxu0 0.0
    %233 = vmatprep.mubr.f32.mxu0 0.0
    %234 = vmatmul.mubr.f32.gmra.mrb[0].mxu0 %v145
    %v235 = vpop.f32.mrb[0].mxu0
    %v236 = vadd.f32 %v167, %v235
    %v237 = vpop.f32.mrb[0].mxu0
    %238 = vdwg.mxu0
    %239 = vmax.xlane.f32.xlu0 %v236
    %v240 = vpop.xlane.xlu0 %239
    %v241 = vsub.f32 %v236, %v240
    %v242 = vmul.f32 %v241, 1.442695
    %v243 = vpow.pop %v242
    %244 = vadd.xlane.f32.xlu0 %v243
    %v245 = vpop.xlane.xlu0 %244
    %v246 = vrcp.pop %v245
    %v247 = vmul.f32 %v243, %v246
    %248 = vst [vmem:[#allocation8] sm:$0xff] %v247
    // Predicated region
    $region34: #{tpu_custom_call.1} parent=1 // pred_check
      _
    $region35: #{tpu_custom_call.1} parent=1 // pred_check_branch
      %250 = sbr.rel (0) target = $region37
    $region36: #{tpu_custom_call.1} parent=1 // pred_region
      %s252 = ssub.s32 128, 128
      %253 = vsyncadd [#allocation4], %s252
      %s255 = sshll.u32 [#allocation8], 4
      %s256 = int_to_ptr.vmem [resolvable:$true] %s255
      %258 = dma.vmem_to_hbm [thread:$0]  %s256, 128, %s5, [#allocation4]
    $region37: #{tpu_custom_call.1} parent=1 // pred_fallthru
      _
    // Predicated region
    $region38: #{tpu_custom_call.1} parent=1 // pred_check
      _
    $region39: #{tpu_custom_call.1} parent=1 // pred_check_branch
      %260 = sbr.rel (0) target = $region41
    $region40: #{tpu_custom_call.1} parent=1 // pred_region
      %261 = dma.done [#allocation4], 128
    $region41: #{tpu_custom_call.1} parent=1 // pred_fallthru
      _
    %262 = vsyncpa [#allocation3], 1
    %263 = vsyncpa [#allocation6], 1
    %264 = vsyncpa [#allocation4], 1

</llo_original>
